<compile_context>
chip_gen: v5e
topology: v5e:2x2
jax: 0.10.0
libtpu: 0.0.40
codegen_flags: <defaults>
</compile_context>

<pallas_src>
import functools

import jax
import jax.numpy as jnp
from jax.experimental import pallas as pl
from jax.experimental.pallas import tpu as pltpu


_LANE = 128            # lane width: last dim of every block padded to this
_SUBLANE = 8           # f32 sublane height
_DEFAULT_TM_MAX = 512  # max batch tile (amortizes ~0.35us/step + MXU fill/drain)


def _round_up(x, m):
    return (x + m - 1) // m * m


def _cdiv(a, b):
    return -(-a // b)


def _sigmoid_f32(y, *, approx):
    # exp runs on the EUP; with approx=True the reciprocal also runs on the EUP,
    # keeping the divide off the VALU (the unit most likely to saturate here).
    return pl.reciprocal(1.0 + jnp.exp(-y), approx=approx)


def _mlp_fused_kernel(*refs, num_linear, mxu_dtype):
    """refs = (x_ref, w0, b0, w1, b1, ..., o_ref). One batch tile per grid step."""
    x_ref, o_ref = refs[0], refs[-1]
    wb = refs[1:-1]

    h = x_ref[...]                                  # already in MXU dtype (pre-cast)
    for i in range(num_linear):
        w = wb[2 * i][...]                          # (in_pad, out_pad), pre-cast MXU dtype
        b = wb[2 * i + 1][...]                      # (1, out_pad), f32 — broadcasts over rows
        lhs = h if (mxu_dtype is None or h.dtype == mxu_dtype) else h.astype(mxu_dtype)
        y = jnp.dot(lhs, w, preferred_element_type=jnp.float32) + b
        if i == num_linear - 1:
            h = _sigmoid_f32(y, approx=False)       # final Sigmoid: exact reciprocal
        else:
            h = y * _sigmoid_f32(y, approx=True)    # SiLU = y * sigmoid(y)
        # TODO(synk): training-mode Dropout (stochastic masking) not implemented;
        #             eval()/p=0 semantics (identity) are used.
    o_ref[...] = h.astype(o_ref.dtype)


def _vmem_budget_bytes():
    # ~75% of physical VMEM: ~96 MiB on v5e/v6e (128 MiB), ~48 MiB on v7x (64 MiB).
    # Conservative (v7x-sized) fallback if the query is unavailable.
    try:
        cap = pltpu.get_tpu_info().vmem_capacity_bytes
    except Exception:
        cap = 64 * 1024 * 1024
    return int(cap) * 3 // 4


def mlp_forward(x, params, *, tm_max=_DEFAULT_TM_MAX, mxu_dtype=jnp.bfloat16):
    """Fused MLP forward. params = [(w, b), ...] with w: (in, out), b: (1, out)."""
    batch, in_dim = x.shape
    num_linear = len(params)
    out_dim = params[-1][0].shape[1]
    w_dtype = mxu_dtype if mxu_dtype is not None else jnp.float32

    # ---- pad every feature dim to a 128-lane multiple; pre-cast weights to MXU dtype ----
    padded_params = []
    in_pad = _round_up(in_dim, _LANE)
    prev_pad = in_pad
    widest_pad = in_pad
    for (w, b) in params:
        din, dout = w.shape
        dout_pad = _round_up(dout, _LANE)
        w_p = (jnp.zeros((prev_pad, dout_pad), jnp.float32)
               .at[:din, :dout].set(w).astype(w_dtype))
        b_p = jnp.zeros((1, dout_pad), jnp.float32).at[:, :dout].set(b)
        padded_params.append((w_p, b_p))
        prev_pad = dout_pad
        widest_pad = max(widest_pad, dout_pad)
    out_pad = prev_pad

    # ---- batch tiling: >= 2 grid steps when the batch allows (engages both v7x TCs),
    #      tiles capped at tm_max, batch never padded far past its sublane-rounded size.
    m_sub = _round_up(batch, _SUBLANE)
    nsteps = max(2, _cdiv(m_sub, tm_max)) if m_sub >= 2 * _SUBLANE else 1
    tm_eff = _round_up(_cdiv(m_sub, nsteps), _SUBLANE)

    # ---- VMEM budget: single-buffered resident weights (Buffered(1)) +
    #      double-buffered x/out tiles + live f32 intermediates (y, sig, h).
    budget = _vmem_budget_bytes()
    weight_bytes = sum(w_p.size * w_p.dtype.itemsize + b_p.size * b_p.dtype.itemsize
                       for w_p, b_p in padded_params)
    x_itemsize = jnp.dtype(w_dtype).itemsize if mxu_dtype is not None else x.dtype.itemsize

    def _tile_bytes(tm):
        return (2 * tm * in_pad * x_itemsize      # double-buffered input tile
                + 2 * tm * out_pad * 4            # double-buffered f32 output tile
                + 3 * tm * widest_pad * 4)        # y / sig / h f32 intermediates

    while tm_eff > _SUBLANE and weight_bytes + _tile_bytes(tm_eff) > budget:
        tm_eff = _round_up(tm_eff // 2, _SUBLANE)
    # TODO(synk): if the resident weights alone exceed VMEM, switch to a per-layer
    #             K/N-tiled pipeline (pltpu.emit_pipeline over HBM weight refs).
    assert weight_bytes + _tile_bytes(tm_eff) <= budget, (
        "MLP weights too large for the fused VMEM-resident kernel")

    m_pad = _round_up(m_sub, tm_eff)
    x_p = (jnp.zeros((m_pad, in_pad), jnp.float32)
           .at[:batch, :in_dim].set(x.astype(jnp.float32)))
    x_p = x_p.astype(w_dtype) if mxu_dtype is not None else x_p.astype(x.dtype)

    in_specs = [pl.BlockSpec((tm_eff, in_pad), lambda i: (i, 0))]
    operands = [x_p]
    for (w_p, b_p) in padded_params:
        # Grid-invariant weights/biases: single-buffered, VMEM-resident for the whole run.
        in_specs.append(pl.BlockSpec(w_p.shape, lambda i: (0, 0),
                                     pipeline_mode=pl.Buffered(1)))
        in_specs.append(pl.BlockSpec(b_p.shape, lambda i: (0, 0),
                                     pipeline_mode=pl.Buffered(1)))
        operands += [w_p, b_p]

    kernel = functools.partial(_mlp_fused_kernel,
                               num_linear=num_linear, mxu_dtype=mxu_dtype)

    out_padded = pl.pallas_call(
        kernel,
        out_shape=jax.ShapeDtypeStruct((m_pad, out_pad), jnp.float32),
        grid=(m_pad // tm_eff,),
        in_specs=in_specs,
        out_specs=pl.BlockSpec((tm_eff, out_pad), lambda i: (i, 0)),
        compiler_params=pltpu.CompilerParams(
            dimension_semantics=("parallel",),   # shards the batch axis across TCs (v7x)
            vmem_limit_bytes=budget,             # per-generation scoped VMEM limit
        ),
    )(*operands)

    return out_padded[:batch, :out_dim].astype(x.dtype)


def init_mlp_params(key, input_dim, hidden_dim, output_dim, num_layers=1):
    """Deterministic parameter init (PyTorch-style uniform). Weights stored as (in, out)."""
    dims = [input_dim] + [hidden_dim] * num_layers + [output_dim]
    params = []
    for i in range(len(dims) - 1):
        key, kw, kb = jax.random.split(key, 3)
        bound = 1.0 / jnp.sqrt(dims[i])
        w = jax.random.uniform(kw, (dims[i], dims[i + 1]), jnp.float32, -bound, bound)
        b = jax.random.uniform(kb, (1, dims[i + 1]), jnp.float32, -bound, bound)
        params.append((w, b))
    return params


def mlp_reference(x, params, mxu_dtype=jnp.bfloat16):
    """Pure-JAX reference using the same bf16-MXU / f32-accumulate split."""
    n = len(params)
    h = x
    for i, (w, b) in enumerate(params):
        if mxu_dtype is not None:
            y = jnp.dot(h.astype(mxu_dtype), w.astype(mxu_dtype),
                        preferred_element_type=jnp.float32) + b
        else:
            y = h @ w + b
        h = jax.nn.sigmoid(y) if i == n - 1 else jax.nn.silu(y)
    return h


if __name__ == "__main__":
    key = jax.random.PRNGKey(0)
    key, kx = jax.random.split(key)

    batch, input_dim, hidden_dim, output_dim, num_layers = 8, 16, 32, 8, 2
    x = jax.random.normal(kx, (batch, input_dim), dtype=jnp.float32)
    params = init_mlp_params(key, input_dim, hidden_dim, output_dim, num_layers)

    out = mlp_forward(x, params)
    out = jax.block_until_ready(out)

    ref = mlp_reference(x, params)
    assert out.shape == (batch, output_dim)
    # bf16 MXU + approx EUP reciprocal in hidden SiLUs -> compare against the
    # bf16-matmul reference with a correspondingly relaxed tolerance.
    assert jnp.allclose(out, ref, atol=2e-2, rtol=2e-2), (
        f"max abs err {jnp.max(jnp.abs(out - ref))}")

    print("KERNEL_OK")
</pallas_src>

<mosaic_0001>
module attributes {stable_mosaic.version = 11 : i64} {
  func.func @_mlp_fused_kernel(%arg0: i32, %arg1: memref<8x128xbf16, #tpu.memory_space<vmem>>, %arg2: memref<128x128xbf16, #tpu.memory_space<vmem>>, %arg3: memref<1x128xf32, #tpu.memory_space<vmem>>, %arg4: memref<128x128xbf16, #tpu.memory_space<vmem>>, %arg5: memref<1x128xf32, #tpu.memory_space<vmem>>, %arg6: memref<128x128xbf16, #tpu.memory_space<vmem>>, %arg7: memref<1x128xf32, #tpu.memory_space<vmem>>, %arg8: memref<8x128xf32, #tpu.memory_space<vmem>>) attributes {dimension_semantics = [#tpu.dimension_semantics<parallel>], iteration_bounds = array<i64: 1>, scalar_prefetch = 0 : i64, scratch_operands = 0 : i64, tpu.core_type = #tpu.core_type<tc>, window_params = [{transform_indices = @transform_0, window_bounds = array<i64: 8, 128>}, {pipeline_mode = #tpu.pipeline_mode<synchronous>, transform_indices = @transform_1, window_bounds = array<i64: 128, 128>}, {pipeline_mode = #tpu.pipeline_mode<synchronous>, transform_indices = @transform_2, window_bounds = array<i64: 1, 128>}, {pipeline_mode = #tpu.pipeline_mode<synchronous>, transform_indices = @transform_3, window_bounds = array<i64: 128, 128>}, {pipeline_mode = #tpu.pipeline_mode<synchronous>, transform_indices = @transform_4, window_bounds = array<i64: 1, 128>}, {pipeline_mode = #tpu.pipeline_mode<synchronous>, transform_indices = @transform_5, window_bounds = array<i64: 128, 128>}, {pipeline_mode = #tpu.pipeline_mode<synchronous>, transform_indices = @transform_6, window_bounds = array<i64: 1, 128>}, {transform_indices = @transform_7, window_bounds = array<i64: 8, 128>}]} {
    %c0 = arith.constant 0 : index
    %c0_0 = arith.constant 0 : index
    %0 = vector.load %arg1[%c0, %c0_0] : memref<8x128xbf16, #tpu.memory_space<vmem>>, vector<8x128xbf16>
    %c0_1 = arith.constant 0 : index
    %c0_2 = arith.constant 0 : index
    %1 = vector.load %arg2[%c0_1, %c0_2] : memref<128x128xbf16, #tpu.memory_space<vmem>>, vector<128x128xbf16>
    %c0_3 = arith.constant 0 : index
    %c0_4 = arith.constant 0 : index
    %2 = vector.load %arg3[%c0_3, %c0_4] : memref<1x128xf32, #tpu.memory_space<vmem>>, vector<1x128xf32>
    %cst = arith.constant dense<0.000000e+00> : vector<8x128xf32>
    %3 = tpu.matmul %0, %1, %cst {dimension_numbers = #tpu.dot_dimension_numbers<[1], [0], [0], [1], [0, 0, 1, 1], [], []>} : vector<8x128xbf16>, vector<128x128xbf16>, vector<8x128xf32> -> vector<8x128xf32>
    %4 = vector.broadcast %2 : vector<1x128xf32> to vector<8x128xf32>
    %5 = arith.addf %3, %4 : vector<8x128xf32>
    %cst_5 = arith.constant 0.000000e+00 : f32
    %6 = vector.broadcast %cst_5 : f32 to vector<8x128xf32>
    %7 = arith.subf %6, %5 : vector<8x128xf32>
    %8 = math.exp %7 : vector<8x128xf32>
    %cst_6 = arith.constant 1.000000e+00 : f32
    %9 = vector.broadcast %cst_6 : f32 to vector<8x128xf32>
    %10 = arith.addf %9, %8 : vector<8x128xf32>
    %11 = tpu.reciprocal %10 {approx = true} : vector<8x128xf32> -> vector<8x128xf32>
    %12 = arith.mulf %5, %11 : vector<8x128xf32>
    %c0_7 = arith.constant 0 : index
    %c0_8 = arith.constant 0 : index
    %13 = vector.load %arg4[%c0_7, %c0_8] : memref<128x128xbf16, #tpu.memory_space<vmem>>, vector<128x128xbf16>
    %c0_9 = arith.constant 0 : index
    %c0_10 = arith.constant 0 : index
    %14 = vector.load %arg5[%c0_9, %c0_10] : memref<1x128xf32, #tpu.memory_space<vmem>>, vector<1x128xf32>
    %15 = arith.truncf %12 : vector<8x128xf32> to vector<8x128xbf16>
    %cst_11 = arith.constant dense<0.000000e+00> : vector<8x128xf32>
    %16 = tpu.matmul %15, %13, %cst_11 {dimension_numbers = #tpu.dot_dimension_numbers<[1], [0], [0], [1], [0, 0, 1, 1], [], []>} : vector<8x128xbf16>, vector<128x128xbf16>, vector<8x128xf32> -> vector<8x128xf32>
    %17 = vector.broadcast %14 : vector<1x128xf32> to vector<8x128xf32>
    %18 = arith.addf %16, %17 : vector<8x128xf32>
    %cst_12 = arith.constant 0.000000e+00 : f32
    %19 = vector.broadcast %cst_12 : f32 to vector<8x128xf32>
    %20 = arith.subf %19, %18 : vector<8x128xf32>
    %21 = math.exp %20 : vector<8x128xf32>
    %cst_13 = arith.constant 1.000000e+00 : f32
    %22 = vector.broadcast %cst_13 : f32 to vector<8x128xf32>
    %23 = arith.addf %22, %21 : vector<8x128xf32>
    %24 = tpu.reciprocal %23 {approx = true} : vector<8x128xf32> -> vector<8x128xf32>
    %25 = arith.mulf %18, %24 : vector<8x128xf32>
    %c0_14 = arith.constant 0 : index
    %c0_15 = arith.constant 0 : index
    %26 = vector.load %arg6[%c0_14, %c0_15] : memref<128x128xbf16, #tpu.memory_space<vmem>>, vector<128x128xbf16>
    %c0_16 = arith.constant 0 : index
    %c0_17 = arith.constant 0 : index
    %27 = vector.load %arg7[%c0_16, %c0_17] : memref<1x128xf32, #tpu.memory_space<vmem>>, vector<1x128xf32>
    %28 = arith.truncf %25 : vector<8x128xf32> to vector<8x128xbf16>
    %cst_18 = arith.constant dense<0.000000e+00> : vector<8x128xf32>
    %29 = tpu.matmul %28, %26, %cst_18 {dimension_numbers = #tpu.dot_dimension_numbers<[1], [0], [0], [1], [0, 0, 1, 1], [], []>} : vector<8x128xbf16>, vector<128x128xbf16>, vector<8x128xf32> -> vector<8x128xf32>
    %30 = vector.broadcast %27 : vector<1x128xf32> to vector<8x128xf32>
    %31 = arith.addf %29, %30 : vector<8x128xf32>
    %cst_19 = arith.constant 0.000000e+00 : f32
    %32 = vector.broadcast %cst_19 : f32 to vector<8x128xf32>
    %33 = arith.subf %32, %31 : vector<8x128xf32>
    %34 = math.exp %33 : vector<8x128xf32>
    %cst_20 = arith.constant 1.000000e+00 : f32
    %35 = vector.broadcast %cst_20 : f32 to vector<8x128xf32>
    %36 = arith.addf %35, %34 : vector<8x128xf32>
    %37 = tpu.reciprocal %36 : vector<8x128xf32> -> vector<8x128xf32>
    %c0_21 = arith.constant 0 : index
    %c0_22 = arith.constant 0 : index
    %38 = vector.load %arg8[%c0_21, %c0_22] : memref<8x128xf32, #tpu.memory_space<vmem>>, vector<8x128xf32>
    tpu.vector_store %arg8[%c0_21, %c0_22], %37 {strides = array<i32>} : memref<8x128xf32, #tpu.memory_space<vmem>>, vector<8x128xf32>,
    return
  }
  func.func @transform_0(%arg0: i32) -> (i32, i32) {
    %c0_i32 = arith.constant 0 : i32
    %c0_i32_0 = arith.constant 0 : i32
    return %arg0, %c0_i32 : i32, i32
  }
  func.func @transform_1(%arg0: i32) -> (i32, i32) {
    %c0_i32 = arith.constant 0 : i32
    %c0_i32_0 = arith.constant 0 : i32
    %c0_i32_1 = arith.constant 0 : i32
    return %c0_i32, %c0_i32_0 : i32, i32
  }
  func.func @transform_2(%arg0: i32) -> (i32, i32) {
    %c0_i32 = arith.constant 0 : i32
    %c0_i32_0 = arith.constant 0 : i32
    %c0_i32_1 = arith.constant 0 : i32
    return %c0_i32, %c0_i32_0 : i32, i32
  }
  func.func @transform_3(%arg0: i32) -> (i32, i32) {
    %c0_i32 = arith.constant 0 : i32
    %c0_i32_0 = arith.constant 0 : i32
    %c0_i32_1 = arith.constant 0 : i32
    return %c0_i32, %c0_i32_0 : i32, i32
  }
  func.func @transform_4(%arg0: i32) -> (i32, i32) {
    %c0_i32 = arith.constant 0 : i32
    %c0_i32_0 = arith.constant 0 : i32
    %c0_i32_1 = arith.constant 0 : i32
    return %c0_i32, %c0_i32_0 : i32, i32
  }
  func.func @transform_5(%arg0: i32) -> (i32, i32) {
    %c0_i32 = arith.constant 0 : i32
    %c0_i32_0 = arith.constant 0 : i32
    %c0_i32_1 = arith.constant 0 : i32
    return %c0_i32, %c0_i32_0 : i32, i32
  }
  func.func @transform_6(%arg0: i32) -> (i32, i32) {
    %c0_i32 = arith.constant 0 : i32
    %c0_i32_0 = arith.constant 0 : i32
    %c0_i32_1 = arith.constant 0 : i32
    return %c0_i32, %c0_i32_0 : i32, i32
  }
  func.func @transform_7(%arg0: i32) -> (i32, i32) {
    %c0_i32 = arith.constant 0 : i32
    %c0_i32_0 = arith.constant 0 : i32
    return %arg0, %c0_i32 : i32, i32
  }
}

</mosaic_0001>

<llo_original>
// kernel: tpu_custom_call.1
$region0: #{tpu_custom_call.1}
  #allocation0 [shape = 'u32[]', space=smem, size = 0x4, offset = 0x4, fixed_abs, tag = 'smem constant byte address 0x4 - core index']
  #allocation1 [shape = 'u32[72,128]{1,0:T(1,128)}', space=vmem, size = 0x9000, scoped, tag = 'internal scratch']
  %s0 = inlined_call_operand.hbm [shape: bf16[8,128], index: 0, kind: input, shape index: {}]
  %s1 = inlined_call_operand.hbm [shape: bf16[128,128], index: 1, kind: input, shape index: {}]
  %s2 = inlined_call_operand.vmem [shape: f32[1,128], index: 2, kind: input, shape index: {}]
  %s3 = inlined_call_operand.hbm [shape: bf16[128,128], index: 3, kind: input, shape index: {}]
  %s4 = inlined_call_operand.vmem [shape: f32[1,128], index: 4, kind: input, shape index: {}]
  %s5 = inlined_call_operand.hbm [shape: bf16[128,128], index: 5, kind: input, shape index: {}]
  %s6 = inlined_call_operand.vmem [shape: f32[1,128], index: 6, kind: input, shape index: {}]
  %s7 = inlined_call_operand.hbm [shape: f32[8,128], index: 7, kind: output, shape index: {}]
  %s8 = sld [smem:[#allocation0]]
  $region54: #{tpu_custom_call.1} parent=0
    _
  %s10 = ssub.s32 1, %s8
  %s11 = scalar_select 0, %s10, %s8
  $region1: #{tpu_custom_call.1} parent=0
    #allocation2 [shape = 'u8[2048]{0}', space=vmem, size = 0x800, scoped, tag = 'input window, operand 0, single buffered']
    #allocation3 [shape = 's32[1]{0}', space=sflag, size = 0x4, scoped, tag = 'scoped memory for tpu_custom_call.1']
    #allocation4 [shape = 's32[1]{0}', space=sflag, size = 0x4, scoped, tag = 'scoped memory for tpu_custom_call.1']
    #allocation5 [shape = 'u8[32768]{0}', space=vmem, size = 0x8000, scoped, tag = 'input window, operand 1, single buffered']
    #allocation6 [shape = 's32[1]{0}', space=sflag, size = 0x4, scoped, tag = 'scoped memory for tpu_custom_call.1']
    #allocation7 [shape = 'u8[32768]{0}', space=vmem, size = 0x8000, scoped, tag = 'input window, operand 3, single buffered']
    #allocation8 [shape = 'u8[32768]{0}', space=vmem, size = 0x8000, scoped, tag = 'input window, operand 5, single buffered']
    #allocation9 [shape = 's32[1]{0}', space=sflag, size = 0x4, scoped, tag = 'scoped memory for tpu_custom_call.1']
    #allocation10 [shape = 'u8[4096]{0}', space=vmem, size = 0x1000, scoped, tag = 'output window, operand 0, single buffered']
    %12 = vsyncpa [#allocation3], 0
    %13 = vsyncpa [#allocation6], 0
    %14 = vsyncpa [#allocation9], 0
    %15 = vsyncpa [#allocation4], 0
    // Predicated region
    $region2: #{tpu_custom_call.1} parent=1 // pred_check
      _
    $region3: #{tpu_custom_call.1} parent=1 // pred_check_branch
      %17 = sbr.rel (0) target = $region5
    $region4: #{tpu_custom_call.1} parent=1 // pred_region
      %19 = vsyncadd [#allocation3], 0
      %s21 = sshll.u32 %s0, 4
      %s22 = int_to_ptr.hbm [resolvable:$true] %s21
      %s23 = sshll.u32 [#allocation2], 4
      %s24 = int_to_ptr.vmem [resolvable:$true] %s23
      %26 = dma.hbm_to_vmem [thread:$0]  %s22, 64, %s24, [#allocation3]
    $region5: #{tpu_custom_call.1} parent=1 // pred_fallthru
      _
    // Predicated region
    $region6: #{tpu_custom_call.1} parent=1 // pred_check
      _
    $region7: #{tpu_custom_call.1} parent=1 // pred_check_branch
      %28 = sbr.rel (0) target = $region9
    $region8: #{tpu_custom_call.1} parent=1 // pred_region
      %30 = vsyncadd [#allocation6], 0
      %s31 = sshll.u32 %s1, 4
      %s32 = int_to_ptr.hbm [resolvable:$true] %s31
      %s33 = sshll.u32 [#allocation5], 4
      %s34 = int_to_ptr.vmem [resolvable:$true] %s33
      %39 = dma.hbm_to_vmem [thread:$0]  %s32, 1024, %s34, [#allocation6], 64, 64, 4
    $region9: #{tpu_custom_call.1} parent=1 // pred_fallthru
      _
    // Predicated region
    $region10: #{tpu_custom_call.1} parent=1 // pred_check
      _
    $region11: #{tpu_custom_call.1} parent=1 // pred_check_branch
      %41 = sbr.rel (0) target = $region13
    $region12: #{tpu_custom_call.1} parent=1 // pred_region
      _
    $region13: #{tpu_custom_call.1} parent=1 // pred_fallthru
      _
    // Predicated region
    $region14: #{tpu_custom_call.1} parent=1 // pred_check
      _
    $region15: #{tpu_custom_call.1} parent=1 // pred_check_branch
      %43 = sbr.rel (0) target = $region17
    $region16: #{tpu_custom_call.1} parent=1 // pred_region
      %45 = vsyncadd [#allocation6], 0
      %s46 = sshll.u32 %s3, 4
      %s47 = int_to_ptr.hbm [resolvable:$true] %s46
      %s48 = sshll.u32 [#allocation7], 4
      %s49 = int_to_ptr.vmem [resolvable:$true] %s48
      %54 = dma.hbm_to_vmem [thread:$0]  %s47, 1024, %s49, [#allocation6], 64, 64, 4
    $region17: #{tpu_custom_call.1} parent=1 // pred_fallthru
      _
    // Predicated region
    $region18: #{tpu_custom_call.1} parent=1 // pred_check
      _
    $region19: #{tpu_custom_call.1} parent=1 // pred_check_branch
      %56 = sbr.rel (0) target = $region21
    $region20: #{tpu_custom_call.1} parent=1 // pred_region
      _
    $region21: #{tpu_custom_call.1} parent=1 // pred_fallthru
      _
    // Predicated region
    $region22: #{tpu_custom_call.1} parent=1 // pred_check
      _
    $region23: #{tpu_custom_call.1} parent=1 // pred_check_branch
      %58 = sbr.rel (0) target = $region25
    $region24: #{tpu_custom_call.1} parent=1 // pred_region
      %60 = vsyncadd [#allocation9], 0
      %s61 = sshll.u32 %s5, 4
      %s62 = int_to_ptr.hbm [resolvable:$true] %s61
      %s63 = sshll.u32 [#allocation8], 4
      %s64 = int_to_ptr.vmem [resolvable:$true] %s63
      %69 = dma.hbm_to_vmem [thread:$0]  %s62, 1024, %s64, [#allocation9], 64, 64, 4
    $region25: #{tpu_custom_call.1} parent=1 // pred_fallthru
      _
    // Predicated region
    $region26: #{tpu_custom_call.1} parent=1 // pred_check
      _
    $region27: #{tpu_custom_call.1} parent=1 // pred_check_branch
      %71 = sbr.rel (0) target = $region29
    $region28: #{tpu_custom_call.1} parent=1 // pred_region
      _
    $region29: #{tpu_custom_call.1} parent=1 // pred_fallthru
      _
    // Predicated region
    $region30: #{tpu_custom_call.1} parent=1 // pred_check
      _
    $region31: #{tpu_custom_call.1} parent=1 // pred_check_branch
      %73 = sbr.rel (0) target = $region33
    $region32: #{tpu_custom_call.1} parent=1 // pred_region
      %75 = dma.done [#allocation3], 64
    $region33: #{tpu_custom_call.1} parent=1 // pred_fallthru
      _
    // Predicated region
    $region34: #{tpu_custom_call.1} parent=1 // pred_check
      _
    $region35: #{tpu_custom_call.1} parent=1 // pred_check_branch
      %77 = sbr.rel (0) target = $region37
    $region36: #{tpu_custom_call.1} parent=1 // pred_region
      %79 = dma.done [#allocation6], 1024
    $region37: #{tpu_custom_call.1} parent=1 // pred_fallthru
      _
    // Predicated region
    $region38: #{tpu_custom_call.1} parent=1 // pred_check
      _
    $region39: #{tpu_custom_call.1} parent=1 // pred_check_branch
      %81 = sbr.rel (0) target = $region41
    $region40: #{tpu_custom_call.1} parent=1 // pred_region
      %83 = dma.done [#allocation6], 1024
    $region41: #{tpu_custom_call.1} parent=1 // pred_fallthru
      _
    // Predicated region
    $region42: #{tpu_custom_call.1} parent=1 // pred_check
      _
    $region43: #{tpu_custom_call.1} parent=1 // pred_check_branch
      %85 = sbr.rel (0) target = $region45
    $region44: #{tpu_custom_call.1} parent=1 // pred_region
      %87 = dma.done [#allocation9], 1024
    $region45: #{tpu_custom_call.1} parent=1 // pred_fallthru
      _
    %v88 = vld [vmem:[#allocation2] sm:$0xf]
    %v89 = vld [vmem:[#allocation5] sm:$0xf]
    %v90 = vld [vmem:[#allocation5 + $0x4] sm:$0xf]
    %v91 = vld [vmem:[#allocation5 + $0x8] sm:$0xf]
    %v92 = vld [vmem:[#allocation5 + $0xc] sm:$0xf]
    %v93 = vld [vmem:[#allocation5 + $0x10] sm:$0xf]
    %v94 = vld [vmem:[#allocation5 + $0x14] sm:$0xf]
    %v95 = vld [vmem:[#allocation5 + $0x18] sm:$0xf]
    %v96 = vld [vmem:[#allocation5 + $0x1c] sm:$0xf]
    %v97 = vld [vmem:[#allocation5 + $0x20] sm:$0xf]
    %v98 = vld [vmem:[#allocation5 + $0x24] sm:$0xf]
    %v99 = vld [vmem:[#allocation5 + $0x28] sm:$0xf]
    %v100 = vld [vmem:[#allocation5 + $0x2c] sm:$0xf]
    %v101 = vld [vmem:[#allocation5 + $0x30] sm:$0xf]
    %v102 = vld [vmem:[#allocation5 + $0x34] sm:$0xf]
    %v103 = vld [vmem:[#allocation5 + $0x38] sm:$0xf]
    %v104 = vld [vmem:[#allocation5 + $0x3c] sm:$0xf]
    %v105 = vld [vmem:[%s2] sm:$0x1]
    %v107 = vperm.slane %v105, 0
    %v125 = vunpack.c.l.b16 %v89
    %v126 = vunpack.c.l.b16 %v90
    %v127 = vunpack.c.l.b16 %v91
    %v128 = vunpack.c.l.b16 %v92
    %v129 = vunpack.c.l.b16 %v93
    %v130 = vunpack.c.l.b16 %v94
    %v131 = vunpack.c.l.b16 %v95
    %v132 = vunpack.c.l.b16 %v96
    %v133 = vunpack.c.l.b16 %v97
    %v134 = vunpack.c.l.b16 %v98
    %v135 = vunpack.c.l.b16 %v99
    %v136 = vunpack.c.l.b16 %v100
    %v137 = vunpack.c.l.b16 %v101
    %v138 = vunpack.c.l.b16 %v102
    %v139 = vunpack.c.l.b16 %v103
    %v140 = vunpack.c.l.b16 %v104
    %v141 = vpack.c.b16 %v126, %v125
    %v142 = vpack.c.b16 %v128, %v127
    %v143 = vpack.c.b16 %v130, %v129
    %v144 = vpack.c.b16 %v132, %v131
    %v145 = vpack.c.b16 %v134, %v133
    %v146 = vpack.c.b16 %v136, %v135
    %v147 = vpack.c.b16 %v138, %v137
    %v148 = vpack.c.b16 %v140, %v139
    %157 = vmatpush.bf16.msra.mxu0 %v148
    %158 = vmatpush.bf16.msra.mxu0 %v147
    %159 = vmatpush.bf16.msra.mxu0 %v146
    %160 = vmatpush.bf16.msra.mxu0 %v145
    %161 = vmatpush.bf16.msra.mxu0 %v144
    %162 = vmatpush.bf16.msra.mxu0 %v143
    %163 = vmatpush.bf16.msra.mxu0 %v142
    %164 = vmatpush.bf16.msra.mxu0 %v141
    %165 = vmatmul.bf16.gmra.mxu0 %v88
    %v166 = vpop.f32.mrf.mxu0
    %v167 = vadd.f32 %v107, %v166
    %v168 = vpop.f32.mrf.mxu0
    %169 = vdwg.mxu0
    %v170 = vsub.f32 0.0, %v167
    %v171 = vmul.f32 %v170, 1.442695
    %v172 = vpow.pop %v171
    %v173 = vadd.f32 %v172, 1.0
    %v174 = vrcp.pop %v173
    %v175 = vmul.f32 %v167, %v174
    %v176 = vld [vmem:[#allocation7] sm:$0xf]
    %v177 = vld [vmem:[#allocation7 + $0x4] sm:$0xf]
    %v178 = vld [vmem:[#allocation7 + $0x8] sm:$0xf]
    %v179 = vld [vmem:[#allocation7 + $0xc] sm:$0xf]
    %v180 = vld [vmem:[#allocation7 + $0x10] sm:$0xf]
    %v181 = vld [vmem:[#allocation7 + $0x14] sm:$0xf]
    %v182 = vld [vmem:[#allocation7 + $0x18] sm:$0xf]
    %v183 = vld [vmem:[#allocation7 + $0x1c] sm:$0xf]
    %v184 = vld [vmem:[#allocation7 + $0x20] sm:$0xf]
    %v185 = vld [vmem:[#allocation7 + $0x24] sm:$0xf]
    %v186 = vld [vmem:[#allocation7 + $0x28] sm:$0xf]
    %v187 = vld [vmem:[#allocation7 + $0x2c] sm:$0xf]
    %v188 = vld [vmem:[#allocation7 + $0x30] sm:$0xf]
    %v189 = vld [vmem:[#allocation7 + $0x34] sm:$0xf]
    %v190 = vld [vmem:[#allocation7 + $0x38] sm:$0xf]
    %v191 = vld [vmem:[#allocation7 + $0x3c] sm:$0xf]
    %v192 = vld [vmem:[%s4] sm:$0x1]
    %v193 = vpack.c.bf16 %v175, %v175
    %v195 = vperm.slane %v192, 0
    %v213 = vunpack.c.l.b16 %v176
    %v214 = vunpack.c.l.b16 %v177
    %v215 = vunpack.c.l.b16 %v178
    %v216 = vunpack.c.l.b16 %v179
    %v217 = vunpack.c.l.b16 %v180
    %v218 = vunpack.c.l.b16 %v181
    %v219 = vunpack.c.l.b16 %v182
    %v220 = vunpack.c.l.b16 %v183
    %v221 = vunpack.c.l.b16 %v184
    %v222 = vunpack.c.l.b16 %v185
    %v223 = vunpack.c.l.b16 %v186
    %v224 = vunpack.c.l.b16 %v187
    %v225 = vunpack.c.l.b16 %v188
    %v226 = vunpack.c.l.b16 %v189
    %v227 = vunpack.c.l.b16 %v190
    %v228 = vunpack.c.l.b16 %v191
    %v229 = vpack.c.b16 %v214, %v213
    %v230 = vpack.c.b16 %v216, %v215
    %v231 = vpack.c.b16 %v218, %v217
    %v232 = vpack.c.b16 %v220, %v219
    %v233 = vpack.c.b16 %v222, %v221
    %v234 = vpack.c.b16 %v224, %v223
    %v235 = vpack.c.b16 %v226, %v225
    %v236 = vpack.c.b16 %v228, %v227
    %245 = vmatpush.bf16.msra.mxu0 %v236
    %246 = vmatpush.bf16.msra.mxu0 %v235
    %247 = vmatpush.bf16.msra.mxu0 %v234
    %248 = vmatpush.bf16.msra.mxu0 %v233
    %249 = vmatpush.bf16.msra.mxu0 %v232
    %250 = vmatpush.bf16.msra.mxu0 %v231
    %251 = vmatpush.bf16.msra.mxu0 %v230
    %252 = vmatpush.bf16.msra.mxu0 %v229
    %253 = vmatmul.bf16.gmra.mxu0 %v193
    %v254 = vpop.f32.mrf.mxu0
    %v255 = vadd.f32 %v195, %v254
    %v256 = vpop.f32.mrf.mxu0
    %257 = vdwg.mxu0
    %v258 = vsub.f32 0.0, %v255
    %v259 = vmul.f32 %v258, 1.442695
    %v260 = vpow.pop %v259
    %v261 = vadd.f32 %v260, 1.0
    %v262 = vrcp.pop %v261
    %v263 = vmul.f32 %v255, %v262
    %v264 = vld [vmem:[#allocation8] sm:$0xf]
    %v265 = vld [vmem:[#allocation8 + $0x4] sm:$0xf]
    %v266 = vld [vmem:[#allocation8 + $0x8] sm:$0xf]
    %v267 = vld [vmem:[#allocation8 + $0xc] sm:$0xf]
    %v268 = vld [vmem:[#allocation8 + $0x10] sm:$0xf]
    %v269 = vld [vmem:[#allocation8 + $0x14] sm:$0xf]
    %v270 = vld [vmem:[#allocation8 + $0x18] sm:$0xf]
    %v271 = vld [vmem:[#allocation8 + $0x1c] sm:$0xf]
    %v272 = vld [vmem:[#allocation8 + $0x20] sm:$0xf]
    %v273 = vld [vmem:[#allocation8 + $0x24] sm:$0xf]
    %v274 = vld [vmem:[#allocation8 + $0x28] sm:$0xf]
    %v275 = vld [vmem:[#allocation8 + $0x2c] sm:$0xf]
    %v276 = vld [vmem:[#allocation8 + $0x30] sm:$0xf]
    %v277 = vld [vmem:[#allocation8 + $0x34] sm:$0xf]
    %v278 = vld [vmem:[#allocation8 + $0x38] sm:$0xf]
    %v279 = vld [vmem:[#allocation8 + $0x3c] sm:$0xf]
    %v280 = vld [vmem:[%s6] sm:$0x1]
    %v281 = vpack.c.bf16 %v263, %v263
    %v283 = vperm.slane %v280, 0
    %v301 = vunpack.c.l.b16 %v264
    %v302 = vunpack.c.l.b16 %v265
    %v303 = vunpack.c.l.b16 %v266
    %v304 = vunpack.c.l.b16 %v267
    %v305 = vunpack.c.l.b16 %v268
    %v306 = vunpack.c.l.b16 %v269
    %v307 = vunpack.c.l.b16 %v270
    %v308 = vunpack.c.l.b16 %v271
    %v309 = vunpack.c.l.b16 %v272
    %v310 = vunpack.c.l.b16 %v273
    %v311 = vunpack.c.l.b16 %v274
    %v312 = vunpack.c.l.b16 %v275
    %v313 = vunpack.c.l.b16 %v276
    %v314 = vunpack.c.l.b16 %v277
    %v315 = vunpack.c.l.b16 %v278
    %v316 = vunpack.c.l.b16 %v279
    %v317 = vpack.c.b16 %v302, %v301
    %v318 = vpack.c.b16 %v304, %v303
    %v319 = vpack.c.b16 %v306, %v305
    %v320 = vpack.c.b16 %v308, %v307
    %v321 = vpack.c.b16 %v310, %v309
    %v322 = vpack.c.b16 %v312, %v311
    %v323 = vpack.c.b16 %v314, %v313
    %v324 = vpack.c.b16 %v316, %v315
    %333 = vmatpush.bf16.msra.mxu0 %v324
    %334 = vmatpush.bf16.msra.mxu0 %v323
    %335 = vmatpush.bf16.msra.mxu0 %v322
    %336 = vmatpush.bf16.msra.mxu0 %v321
    %337 = vmatpush.bf16.msra.mxu0 %v320
    %338 = vmatpush.bf16.msra.mxu0 %v319
    %339 = vmatpush.bf16.msra.mxu0 %v318
    %340 = vmatpush.bf16.msra.mxu0 %v317
    %341 = vmatmul.bf16.gmra.mxu0 %v281
    %v342 = vpop.f32.mrf.mxu0
    %v343 = vadd.f32 %v283, %v342
    %v344 = vpop.f32.mrf.mxu0
    %345 = vdwg.mxu0
    %v346 = vsub.f32 0.0, %v343
    %v347 = vmul.f32 %v346, 1.442695
    %v348 = vpow.pop %v347
    %v349 = vadd.f32 %v348, 1.0
    %v350 = vrcp.pop %v349
    %v351 = vmul.f32 %v349, %v350
    %v352 = vsub.f32 1.0, %v351
    %v353 = vmul.f32 %v350, %v352
    %v354 = vadd.f32 %v350, %v353
    %vm355 = vweird.f32 %v349
    %vm356 = vweird.f32 %v350
    %vm357 = vmor %vm355, %vm356
    %v358 = vsel %vm357, %v350, %v354
    %v359 = vand.u32 2147483647, %v349
    %vm360 = vcmp.eq.f32.partialorder %v359, 8.507059e+37
    %v361 = vand.u32 %v349, 2147483648
    %v362 = vor.u32 1.1754944e-38, %v361
    %v363 = vsel %vm360, %v362, %v358
    %364 = vst [vmem:[#allocation10] sm:$0xff] %v363
    // Predicated region
    $region46: #{tpu_custom_call.1} parent=1 // pred_check
      _
    $region47: #{tpu_custom_call.1} parent=1 // pred_check_branch
      %366 = sbr.rel (0) target = $region49
    $region48: #{tpu_custom_call.1} parent=1 // pred_region
      %368 = vsyncadd [#allocation4], 0
      %s370 = sshll.u32 [#allocation10], 4
      %s371 = int_to_ptr.vmem [resolvable:$true] %s370
      %s372 = sshll.u32 %s7, 4
      %s373 = int_to_ptr.hbm [resolvable:$true] %s372
      %375 = dma.vmem_to_hbm [thread:$0]  %s371, 128, %s373, [#allocation4]
    $region49: #{tpu_custom_call.1} parent=1 // pred_fallthru
      _
    // Predicated region
    $region50: #{tpu_custom_call.1} parent=1 // pred_check
      _
    $region51: #{tpu_custom_call.1} parent=1 // pred_check_branch
      %377 = sbr.rel (0) target = $region53
    $region52: #{tpu_custom_call.1} parent=1 // pred_region
      %379 = dma.done [#allocation4], 128
    $region53: #{tpu_custom_call.1} parent=1 // pred_fallthru
      _
    %380 = vsyncpa [#allocation3], 1
    %381 = vsyncpa [#allocation6], 1
    %382 = vsyncpa [#allocation9], 1
    %383 = vsyncpa [#allocation4], 1

</llo_original>
